<compile_context>
chip_gen: v5e
topology: v5e:2x2
jax: 0.10.0
libtpu: 0.0.40
codegen_flags: <defaults>
</compile_context>

<pallas_src>
import functools

import jax
import jax.numpy as jnp
import numpy as np
from jax import lax
from jax.experimental import pallas as pl
from jax.experimental.pallas import tpu as pltpu


# ----------------------------- tiled linear ----------------------------------

def _linear_kernel_nobias(x_ref, w_ref, o_ref, acc_ref):
    k = pl.program_id(2)

    @pl.when(k == 0)
    def _():
        acc_ref[...] = jnp.zeros_like(acc_ref)

    acc_ref[...] += jnp.dot(
        x_ref[...], w_ref[...], preferred_element_type=jnp.float32
    )

    @pl.when(k == pl.num_programs(2) - 1)
    def _():
        o_ref[...] = acc_ref[...].astype(o_ref.dtype)


def _linear_kernel_bias(x_ref, w_ref, b_ref, o_ref, acc_ref):
    k = pl.program_id(2)

    @pl.when(k == 0)
    def _():
        acc_ref[...] = jnp.zeros_like(acc_ref)

    acc_ref[...] += jnp.dot(
        x_ref[...], w_ref[...], preferred_element_type=jnp.float32
    )

    @pl.when(k == pl.num_programs(2) - 1)
    def _():
        # fold the bias add into the finalize step (once per output tile).
        o_ref[...] = (acc_ref[...] + b_ref[...]).astype(o_ref.dtype)


def _pick_tile(size, target, align):
    """Largest tile <= target that divides `size` and is `align`-aligned,
    falling back to the full extent (always a legal block shape)."""
    if size <= target:
        return size
    t = (target // align) * align
    while t >= align:
        if size % t == 0:
            return t
        t -= align
    return size


def pallas_linear(x2d, w, b=None, *, out_dtype=jnp.float32,
                  tm=512, tn=512, tk=512):
    """x2d: (M, K), w: (K, N), optional b: (1, N).  Returns (M, N)."""
    M, K = x2d.shape
    N = w.shape[1]

    tm = _pick_tile(M, tm, 8)     # sublane dim of x / out
    tn = _pick_tile(N, tn, 128)   # lane dim of w / out (MXU-pass aligned)
    tk = _pick_tile(K, tk, 128)   # lane dim of x, sublane dim of w

    grid = (M // tm, N // tn, K // tk)

    in_specs = [
        pl.BlockSpec((tm, tk), lambda i, j, k: (i, k)),
        pl.BlockSpec((tk, tn), lambda i, j, k: (k, j)),
    ]
    args = (x2d, w)
    if b is not None:
        in_specs.append(pl.BlockSpec((1, tn), lambda i, j, k: (0, j)))
        args = (x2d, w, b)
        kernel = _linear_kernel_bias
    else:
        kernel = _linear_kernel_nobias

    return pl.pallas_call(
        kernel,
        out_shape=jax.ShapeDtypeStruct((M, N), out_dtype),
        grid=grid,
        in_specs=in_specs,
        out_specs=pl.BlockSpec((tm, tn), lambda i, j, k: (i, j)),
        scratch_shapes=[pltpu.VMEM((tm, tn), jnp.float32)],
        compiler_params=pltpu.CompilerParams(
            dimension_semantics=("parallel", "parallel", "arbitrary"),
            vmem_limit_bytes=32 * 1024 * 1024,
        ),
    )(*args)


# --------------------- fused attention + output projection -------------------

def _attn_proj_kernel(q_ref, k_ref, v_ref, wp_ref, bp_ref, o_ref, *,
                      num_heads, scale):
    # q: (1, N, C)  k: (1, KV, C)  v: (1, KV, Dv)  wp: (Dv, Do)  bp: (1, Do)
    q = q_ref[0]            # (N, C)   bf16
    k = k_ref[0]            # (KV, C)  bf16
    v = v_ref[0]            # (KV, Dv) bf16
    wp = wp_ref[...]        # (Dv, Do) bf16

    N, C = q.shape
    Dv = v.shape[-1]
    Do = wp.shape[-1]
    hd = C // num_heads
    hdv = Dv // num_heads

    # Accumulate the projected output directly (lane-dense, width Do).
    acc = jnp.zeros((N, Do), jnp.float32) + bp_ref[...]

    for h in range(num_heads):            # static unroll over heads
        q_h = q[:, h * hd:(h + 1) * hd] * scale          # fold scale into q
        k_h = k[:, h * hd:(h + 1) * hd]
        v_h = v[:, h * hdv:(h + 1) * hdv]

        # scores = q_h @ k_h.T   (contract last dims, f32 accumulation)
        s = lax.dot_general(q_h, k_h, (((1,), (1,)), ((), ())),
                            preferred_element_type=jnp.float32)   # (N, KV)
        s = s - jnp.max(s, axis=-1, keepdims=True)
        p = jnp.exp(s)
        p = p * pl.reciprocal(jnp.sum(p, axis=-1, keepdims=True), approx=True)

        o_h = jnp.dot(p.astype(v_h.dtype), v_h,
                      preferred_element_type=jnp.float32)          # (N, hdv)

        # (attn @ v) @ W_proj == sum_h  o_h @ W_proj[h*hdv:(h+1)*hdv, :]
        wp_h = wp[h * hdv:(h + 1) * hdv, :]
        acc = acc + jnp.dot(o_h.astype(wp_h.dtype), wp_h,
                            preferred_element_type=jnp.float32)

    o_ref[0] = acc.astype(o_ref.dtype)


def pallas_attention_proj(q, k, v, wp, bp, *, scale, num_heads,
                          out_dtype=jnp.float32):
    # q: (B, N, C)  k: (B, KV, C)  v: (B, KV, Dv)  wp: (Dv, Do)  bp: (1, Do)
    B, N, C = q.shape
    KV = k.shape[1]
    Dv = v.shape[2]
    Do = wp.shape[1]

    kernel = functools.partial(_attn_proj_kernel,
                               num_heads=num_heads, scale=scale)
    return pl.pallas_call(
        kernel,
        out_shape=jax.ShapeDtypeStruct((B, N, Do), out_dtype),
        grid=(B,),
        in_specs=[
            pl.BlockSpec((1, N, C), lambda b: (b, 0, 0)),
            pl.BlockSpec((1, KV, C), lambda b: (b, 0, 0)),
            pl.BlockSpec((1, KV, Dv), lambda b: (b, 0, 0)),
            pl.BlockSpec((Dv, Do), lambda b: (0, 0)),
            pl.BlockSpec((1, Do), lambda b: (0, 0)),
        ],
        out_specs=pl.BlockSpec((1, N, Do), lambda b: (b, 0, 0)),
        compiler_params=pltpu.CompilerParams(
            dimension_semantics=("parallel",),
            vmem_limit_bytes=32 * 1024 * 1024,
        ),
    )(q, k, v, wp, bp)


# ------------------------------- module ---------------------------------------

class CrossAttentionPallas:
    """JAX/Pallas reimplementation of the PyTorch CrossAttention module."""

    def __init__(self, dim, v_dim, kv_num, num_heads=8, qkv_bias=False,
                 qk_scale=None, mxu_dtype=jnp.bfloat16,
                 key=jax.random.PRNGKey(0)):
        assert dim % num_heads == 0 and v_dim % num_heads == 0
        self.dim = dim
        self.v_dim = v_dim
        self.kv_num = kv_num
        self.num_heads = num_heads
        self.qkv_bias = qkv_bias
        self.mxu_dtype = mxu_dtype
        head_dim = dim // num_heads
        self.scale = qk_scale or head_dim ** (-0.5)

        k1, k2, k3, k4, k5 = jax.random.split(key, 5)
        init = lambda k, shp: (0.02 * jax.random.normal(k, shp, jnp.float32))
        # weights stored as (in, out); bf16 for MXU inputs, f32 accumulation.
        self.wq = init(k1, (dim, dim)).astype(mxu_dtype)
        self.wk = init(k2, (dim, dim)).astype(mxu_dtype)
        self.wv = init(k3, (v_dim, v_dim)).astype(mxu_dtype)
        self.wp = init(k4, (v_dim, dim)).astype(mxu_dtype)
        # qkv_bias=False -> no q/k/v bias (the add is skipped entirely).
        self.bq = None if not qkv_bias else jnp.zeros((1, dim), jnp.float32)
        self.bk = None if not qkv_bias else jnp.zeros((1, dim), jnp.float32)
        self.bv = None if not qkv_bias else jnp.zeros((1, v_dim), jnp.float32)
        self.bp = init(k5, (1, dim))          # proj bias kept in f32
        # TODO(synk): attn_drop / proj_drop are identity (p=0.0, eval mode);
        # stochastic dropout not implemented.

    def __call__(self, xq, xk, xv):
        B, N, C = xq.shape
        v_dim = xv.shape[-1]
        KV = self.kv_num
        dt = self.mxu_dtype

        # q/k/v projections: tiled, pipelined matmuls (bf16 MXU, f32 acc).
        q = pallas_linear(xq.reshape(B * N, C).astype(dt), self.wq,
                          self.bq, out_dtype=dt).reshape(B, N, C)
        k = pallas_linear(xk.reshape(B * KV, C).astype(dt), self.wk,
                          self.bk, out_dtype=dt).reshape(B, KV, C)
        v = pallas_linear(xv.reshape(B * KV, v_dim).astype(dt), self.wv,
                          self.bv, out_dtype=dt).reshape(B, KV, v_dim)

        # Fused multi-head attention + output projection + proj bias.
        # No HBM transposes: heads are split inside the kernel.
        out = pallas_attention_proj(q, k, v, self.wp, self.bp,
                                    scale=self.scale,
                                    num_heads=self.num_heads,
                                    out_dtype=jnp.float32)
        return out                              # (B, N, dim)


# ------------------------------ reference ------------------------------------

def reference(mod, xq, xk, xv):
    B, N, C = xq.shape
    v_dim = xv.shape[-1]
    H, KV = mod.num_heads, mod.kv_num
    wq = mod.wq.astype(jnp.float32)
    wk = mod.wk.astype(jnp.float32)
    wv = mod.wv.astype(jnp.float32)
    wp = mod.wp.astype(jnp.float32)
    q = (xq @ wq).reshape(B, N, H, C // H).transpose(0, 2, 1, 3)
    k = (xk @ wk).reshape(B, KV, H, C // H).transpose(0, 2, 1, 3)
    v = (xv @ wv).reshape(B, KV, H, v_dim // H).transpose(0, 2, 1, 3)
    attn = jnp.einsum("bhnd,bhkd->bhnk", q, k) * mod.scale
    attn = jax.nn.softmax(attn, axis=-1)
    x = jnp.einsum("bhnk,bhkd->bhnd", attn, v).transpose(0, 2, 1, 3)
    x = x.reshape(B, N, v_dim)
    return x @ wp + mod.bp


# -------------------------------- main ----------------------------------------

if __name__ == "__main__":
    B, N, KV = 2, 8, 8
    dim, v_dim, heads = 32, 32, 4

    key = jax.random.PRNGKey(0)
    kq, kk, kv, kmod = jax.random.split(key, 4)
    xq = jax.random.normal(kq, (B, N, dim), jnp.float32)
    xk = jax.random.normal(kk, (B, KV, dim), jnp.float32)
    xv = jax.random.normal(kv, (B, KV, v_dim), jnp.float32)

    mod = CrossAttentionPallas(dim, v_dim, KV, num_heads=heads, key=kmod)

    out = mod(xq, xk, xv)
    jax.block_until_ready(out)

    ref = reference(mod, xq, xk, xv)
    # bf16 MXU inputs (f32 accumulation) -> looser tolerance than pure f32.
    np.testing.assert_allclose(np.asarray(out), np.asarray(ref),
                               atol=2e-3, rtol=2e-2)

    print("KERNEL_OK")
</pallas_src>

<mosaic_0001>
module attributes {stable_mosaic.version = 11 : i64} {
  func.func @_linear_kernel_nobias(%arg0: i32, %arg1: i32, %arg2: i32, %arg3: memref<16x32xbf16, #tpu.memory_space<vmem>>, %arg4: memref<32x32xbf16, #tpu.memory_space<vmem>>, %arg5: memref<16x32xbf16, #tpu.memory_space<vmem>>, %arg6: memref<16x32xf32, #tpu.memory_space<vmem>>) attributes {dimension_semantics = [#tpu.dimension_semantics<parallel>, #tpu.dimension_semantics<parallel>, #tpu.dimension_semantics<arbitrary>], iteration_bounds = array<i64: 1, 1, 1>, scalar_prefetch = 0 : i64, scratch_operands = 1 : i64, tpu.core_type = #tpu.core_type<tc>, window_params = [{transform_indices = @transform_0, window_bounds = array<i64: 16, 32>}, {transform_indices = @transform_1, window_bounds = array<i64: 32, 32>}, {transform_indices = @transform_2, window_bounds = array<i64: 16, 32>}]} {
    %c0_i32 = arith.constant 0 : i32
    %0 = arith.cmpi eq, %arg2, %c0_i32 : i32
    %1 = arith.extui %0 : i1 to i32
    %c0_i32_0 = arith.constant 0 : i32
    %2 = arith.cmpi ne, %1, %c0_i32_0 : i32
    scf.if %2 {
      %cst_10 = arith.constant 0.000000e+00 : f32
      %12 = vector.broadcast %cst_10 : f32 to vector<16x32xf32>
      %c0_11 = arith.constant 0 : index
      %c0_12 = arith.constant 0 : index
      %13 = vector.load %arg6[%c0_11, %c0_12] : memref<16x32xf32, #tpu.memory_space<vmem>>, vector<16x32xf32>
      tpu.vector_store %arg6[%c0_11, %c0_12], %12 {strides = array<i32>} : memref<16x32xf32, #tpu.memory_space<vmem>>, vector<16x32xf32>,
    } else {
    }
    %c0 = arith.constant 0 : index
    %c0_1 = arith.constant 0 : index
    %3 = vector.load %arg6[%c0, %c0_1] : memref<16x32xf32, #tpu.memory_space<vmem>>, vector<16x32xf32>
    %c0_2 = arith.constant 0 : index
    %c0_3 = arith.constant 0 : index
    %4 = vector.load %arg3[%c0_2, %c0_3] : memref<16x32xbf16, #tpu.memory_space<vmem>>, vector<16x32xbf16>
    %c0_4 = arith.constant 0 : index
    %c0_5 = arith.constant 0 : index
    %5 = vector.load %arg4[%c0_4, %c0_5] : memref<32x32xbf16, #tpu.memory_space<vmem>>, vector<32x32xbf16>
    %cst = arith.constant dense<0.000000e+00> : vector<16x32xf32>
    %6 = tpu.matmul %4, %5, %cst {dimension_numbers = #tpu.dot_dimension_numbers<[1], [0], [0], [1], [0, 0, 1, 1], [], []>} : vector<16x32xbf16>, vector<32x32xbf16>, vector<16x32xf32> -> vector<16x32xf32>
    %7 = arith.addf %3, %6 : vector<16x32xf32>
    %c0_6 = arith.constant 0 : index
    %c0_7 = arith.constant 0 : index
    %8 = vector.load %arg6[%c0_6, %c0_7] : memref<16x32xf32, #tpu.memory_space<vmem>>, vector<16x32xf32>
    tpu.vector_store %arg6[%c0_6, %c0_7], %7 {strides = array<i32>} : memref<16x32xf32, #tpu.memory_space<vmem>>, vector<16x32xf32>,
    %c0_i32_8 = arith.constant 0 : i32
    %9 = arith.cmpi eq, %arg2, %c0_i32_8 : i32
    %10 = arith.extui %9 : i1 to i32
    %c0_i32_9 = arith.constant 0 : i32
    %11 = arith.cmpi ne, %10, %c0_i32_9 : i32
    scf.if %11 {
      %c0_10 = arith.constant 0 : index
      %c0_11 = arith.constant 0 : index
      %12 = vector.load %arg6[%c0_10, %c0_11] : memref<16x32xf32, #tpu.memory_space<vmem>>, vector<16x32xf32>
      %13 = arith.truncf %12 : vector<16x32xf32> to vector<16x32xbf16>
      %c0_12 = arith.constant 0 : index
      %c0_13 = arith.constant 0 : index
      %14 = vector.load %arg5[%c0_12, %c0_13] : memref<16x32xbf16, #tpu.memory_space<vmem>>, vector<16x32xbf16>
      tpu.vector_store %arg5[%c0_12, %c0_13], %13 {strides = array<i32>} : memref<16x32xbf16, #tpu.memory_space<vmem>>, vector<16x32xbf16>,
    } else {
    }
    return
  }
  func.func @transform_0(%arg0: i32, %arg1: i32, %arg2: i32) -> (i32, i32) {
    %c0_i32 = arith.constant 0 : i32
    return %arg0, %arg2 : i32, i32
  }
  func.func @transform_1(%arg0: i32, %arg1: i32, %arg2: i32) -> (i32, i32) {
    %c0_i32 = arith.constant 0 : i32
    return %arg2, %arg1 : i32, i32
  }
  func.func @transform_2(%arg0: i32, %arg1: i32, %arg2: i32) -> (i32, i32) {
    %c0_i32 = arith.constant 0 : i32
    return %arg0, %arg1 : i32, i32
  }
}

</mosaic_0001>

<llo_original>
// kernel: tpu_custom_call.1
$region0: #{tpu_custom_call.1}
  #allocation0 [shape = 'u32[]', space=smem, size = 0x4, offset = 0x4, fixed_abs, tag = 'smem constant byte address 0x4 - core index']
  #allocation1 [shape = 'u32[72,128]{1,0:T(1,128)}', space=vmem, size = 0x9000, scoped, tag = 'internal scratch']
  #allocation2 [shape = 'f32[16,32]{1,0:T(8,128)}', space=vmem, size = 0x2000, scoped, tag = 'scratch operand']
  %s0 = inlined_call_operand.hbm [shape: bf16[16,32], index: 0, kind: input, shape index: {}]
  %s1 = inlined_call_operand.hbm [shape: bf16[32,32], index: 1, kind: input, shape index: {}]
  %s2 = inlined_call_operand.hbm [shape: bf16[16,32], index: 2, kind: output, shape index: {}]
  %s3 = sld [smem:[#allocation0]]
  $region34: #{tpu_custom_call.1} parent=0
    _
  %s5 = ssub.s32 1, %s3
  %s6 = scalar_select 0, %s5, %s3
  $region1: #{tpu_custom_call.1} parent=0
    #allocation3 [shape = 'u8[4096]{0}', space=vmem, size = 0x1000, scoped, tag = 'input window, operand 0, single buffered']
    #allocation4 [shape = 's32[1]{0}', space=sflag, size = 0x4, scoped, tag = 'scoped memory for tpu_custom_call.1']
    #allocation5 [shape = 's32[1]{0}', space=sflag, size = 0x4, scoped, tag = 'scoped memory for tpu_custom_call.1']
    #allocation6 [shape = 'u8[8192]{0}', space=vmem, size = 0x2000, scoped, tag = 'input window, operand 1, single buffered']
    #allocation7 [shape = 's32[1]{0}', space=sflag, size = 0x4, scoped, tag = 'scoped memory for tpu_custom_call.1']
    #allocation8 [shape = 'u8[4096]{0}', space=vmem, size = 0x1000, scoped, tag = 'output window, operand 0, single buffered']
    %7 = vsyncpa [#allocation4], 0
    %8 = vsyncpa [#allocation7], 0
    %9 = vsyncpa [#allocation5], 0
    // Predicated region
    $region2: #{tpu_custom_call.1} parent=1 // pred_check
      _
    $region3: #{tpu_custom_call.1} parent=1 // pred_check_branch
      %11 = sbr.rel (0) target = $region5
    $region4: #{tpu_custom_call.1} parent=1 // pred_region
      %13 = vsyncadd [#allocation4], 0
      %s14 = sshll.u32 %s0, 4
      %s15 = int_to_ptr.hbm [resolvable:$true] %s14
      %s16 = sshll.u32 [#allocation3], 4
      %s17 = int_to_ptr.vmem [resolvable:$true] %s16
      %22 = dma.hbm_to_vmem [thread:$0]  %s15, 128, %s17, [#allocation4], 64, 64, 4
    $region5: #{tpu_custom_call.1} parent=1 // pred_fallthru
      _
    // Predicated region
    $region6: #{tpu_custom_call.1} parent=1 // pred_check
      _
    $region7: #{tpu_custom_call.1} parent=1 // pred_check_branch
      %24 = sbr.rel (0) target = $region9
    $region8: #{tpu_custom_call.1} parent=1 // pred_region
      %26 = vsyncadd [#allocation7], 0
      %s27 = sshll.u32 %s1, 4
      %s28 = int_to_ptr.hbm [resolvable:$true] %s27
      %s29 = sshll.u32 [#allocation6], 4
      %s30 = int_to_ptr.vmem [resolvable:$true] %s29
      %35 = dma.hbm_to_vmem [thread:$0]  %s28, 256, %s30, [#allocation7], 64, 64, 4
    $region9: #{tpu_custom_call.1} parent=1 // pred_fallthru
      _
    // Predicated region
    $region10: #{tpu_custom_call.1} parent=1 // pred_check
      _
    $region11: #{tpu_custom_call.1} parent=1 // pred_check_branch
      %37 = sbr.rel (0) target = $region13
    $region12: #{tpu_custom_call.1} parent=1 // pred_region
      %39 = dma.done [#allocation4], 128
    $region13: #{tpu_custom_call.1} parent=1 // pred_fallthru
      _
    // Predicated region
    $region14: #{tpu_custom_call.1} parent=1 // pred_check
      _
    $region15: #{tpu_custom_call.1} parent=1 // pred_check_branch
      %41 = sbr.rel (0) target = $region17
    $region16: #{tpu_custom_call.1} parent=1 // pred_region
      %43 = dma.done [#allocation7], 256
    $region17: #{tpu_custom_call.1} parent=1 // pred_fallthru
      _
    %p45 = scmp.eq.s32.totalorder 0, 0
    // Predicated region
    $region18: #{tpu_custom_call.1} parent=1 // pred_check
      %p46 = pneg %p45
    $region19: #{tpu_custom_call.1} parent=1 // pred_check_branch
      %48 = sbr.rel (%p46) target = $region21
    $region20: #{tpu_custom_call.1} parent=1 // pred_region
      %vm49 = vcmask 261120
      %50 = vst.msk [vmem:[#allocation2] sm:$0xff] %vm49, 0.0
      %51 = vst.msk [vmem:[#allocation2 + $0x8] sm:$0xff] %vm49, 0.0
    $region21: #{tpu_custom_call.1} parent=1 // pred_fallthru
      _
    %v52 = vld [vmem:[#allocation2] sm:$0xff]
    %v53 = vld [vmem:[#allocation2 + $0x8] sm:$0xff]
    %v54 = vld [vmem:[#allocation3] sm:$0xf]
    %v55 = vld [vmem:[#allocation3 + $0x4] sm:$0xf]
    %v56 = vld [vmem:[#allocation6] sm:$0xf]
    %v57 = vld [vmem:[#allocation6 + $0x4] sm:$0xf]
    %v58 = vld [vmem:[#allocation6 + $0x8] sm:$0xf]
    %v59 = vld [vmem:[#allocation6 + $0xc] sm:$0xf]
    %v62 = vunpack.c.l.b16 %v54
    %v63 = vunpack.c.l.b16 %v55
    %v64 = vpack.c.b16 %v63, %v62
    %v69 = vunpack.c.l.b16 %v56
    %v70 = vunpack.c.l.b16 %v57
    %v71 = vunpack.c.l.b16 %v58
    %v72 = vunpack.c.l.b16 %v59
    %v73 = vpack.c.b16 %v70, %v69
    %v74 = vpack.c.b16 %v72, %v71
    %vm77 = vcmask 261120
    %v79 = vsel %vm77, %v64, 0
    %81 = vmatpush.bf16.msra.mxu0 0
    %82 = vmatpush.bf16.msra.mxu0 0
    %83 = vmatpush.bf16.msra.mxu0 0
    %84 = vmatpush.bf16.msra.mxu0 0
    %85 = vmatpush.bf16.msra.mxu0 0
    %86 = vmatpush.bf16.msra.mxu0 0
    %87 = vmatpush.bf16.msra.mxu0 %v74
    %88 = vmatpush.bf16.msra.mxu0 %v73
    %89 = vmatmul.bf16.gmra.mxu0 %v79
    %v90 = vpop.f32.mrf.mxu0
    %v91 = vadd.f32 0.0, %v90
    %v92 = vpop.f32.mrf.mxu0
    %v93 = vadd.f32 0.0, %v92
    %94 = vdwg.mxu0
    %v95 = vadd.f32 %v52, %v91
    %v96 = vadd.f32 %v53, %v93
    %97 = vst.msk [vmem:[#allocation2] sm:$0xff] %vm77, %v95
    %98 = vst.msk [vmem:[#allocation2 + $0x8] sm:$0xff] %vm77, %v96
    // Predicated region
    $region22: #{tpu_custom_call.1} parent=1 // pred_check
      %p99 = pneg %p45
    $region23: #{tpu_custom_call.1} parent=1 // pred_check_branch
      %101 = sbr.rel (%p99) target = $region25
    $region24: #{tpu_custom_call.1} parent=1 // pred_region
      %v102 = vld [vmem:[#allocation2] sm:$0xff]
      %v103 = vld [vmem:[#allocation2 + $0x8] sm:$0xff]
      %v104 = vpack.c.bf16 %v102, %v102
      %v105 = vpack.c.bf16 %v103, %v103
      %vm106 = vcmask 257024
      %107 = vst.msk [vmem:[#allocation8] sm:$0xf] %vm106, %v104
      %108 = vst.msk [vmem:[#allocation8 + $0x4] sm:$0xf] %vm106, %v105
    $region25: #{tpu_custom_call.1} parent=1 // pred_fallthru
      _
    // Predicated region
    $region26: #{tpu_custom_call.1} parent=1 // pred_check
      _
    $region27: #{tpu_custom_call.1} parent=1 // pred_check_branch
      %110 = sbr.rel (0) target = $region29
    $region28: #{tpu_custom_call.1} parent=1 // pred_region
      %112 = vsyncadd [#allocation5], 0
      %s113 = sshll.u32 [#allocation8], 4
      %s114 = int_to_ptr.vmem [resolvable:$true] %s113
      %s115 = sshll.u32 %s2, 4
      %s116 = int_to_ptr.hbm [resolvable:$true] %s115
      %121 = dma.vmem_to_hbm [thread:$0]  %s114, 128, %s116, [#allocation5], 64, 64, 4
    $region29: #{tpu_custom_call.1} parent=1 // pred_fallthru
      _
    // Predicated region
    $region30: #{tpu_custom_call.1} parent=1 // pred_check
      _
    $region31: #{tpu_custom_call.1} parent=1 // pred_check_branch
      %123 = sbr.rel (0) target = $region33
    $region32: #{tpu_custom_call.1} parent=1 // pred_region
      %125 = dma.done [#allocation5], 128
    $region33: #{tpu_custom_call.1} parent=1 // pred_fallthru
      _
    %126 = vsyncpa [#allocation4], 1
    %127 = vsyncpa [#allocation7], 1
    %128 = vsyncpa [#allocation5], 1

</llo_original>
